<compile_context>
chip_gen: v5e
topology: v5e:2x2
jax: 0.10.0
libtpu: 0.0.40
codegen_flags: <defaults>
</compile_context>

<pallas_src>
import functools
import math

import jax
import jax.numpy as jnp
from jax.experimental import pallas as pl
from jax.experimental.pallas import tpu as pltpu

_NEG = -1e30                      # large negative instead of -inf; exp() underflows to 0
_VMEM_LIMIT = 32 * 1024 * 1024    # explicit scoped-VMEM limit (safe on v5e/v6e/v7x)
_MAX_K_TILE = 512                 # L_K tile for kernel 1 (bounds VMEM to O(L_Q * tile))


def _pick_k_tile(l_k, max_tile=_MAX_K_TILE):
    """Largest multiple-of-16 tile <= max_tile dividing L_K (else full L_K)."""
    if l_k <= max_tile:
        return l_k
    t = max_tile - (max_tile % 16)
    while t >= 16:
        if l_k % t == 0:
            return t
        t -= 16
    return l_k


# --------------------------------------------------------------------------- #
# Kernel 1: sparsity measure M = max(sampled QK) - mean(sampled QK)
# --------------------------------------------------------------------------- #
def _m_kernel(q_ref, k_ref, cnt_ref, m_ref, max_sc, sum_sc, *, inv_sample_k):
    kt = pl.program_id(2)

    @pl.when(kt == 0)
    def _():
        max_sc[...] = jnp.full_like(max_sc, _NEG)
        sum_sc[...] = jnp.zeros_like(sum_sc)

    q = q_ref[0, 0]                              # (L_Q, D)  bf16
    k = k_ref[0, 0]                              # (TK,  D)  bf16
    cnt = cnt_ref[...].astype(jnp.float32)       # (TK, L_Q) sample multiplicities

    # Transposed scores (TK, L_Q): queries live on the lane axis so the
    # per-query reductions below produce lane-dense (1, L_Q) rows.
    s = jax.lax.dot_general(k, q, (((1,), (1,)), ((), ())),
                            preferred_element_type=jnp.float32)

    max_sc[...] = jnp.maximum(
        max_sc[...],
        jnp.max(jnp.where(cnt > 0.0, s, _NEG), axis=0, keepdims=True))
    sum_sc[...] = sum_sc[...] + jnp.sum(s * cnt, axis=0, keepdims=True)

    @pl.when(kt == pl.num_programs(2) - 1)
    def _():
        m_ref[0, 0] = max_sc[...] - sum_sc[...] * inv_sample_k   # (1, L_Q)


def _compute_sparsity_measure(Qb, Kb, cnt_t, sample_k):
    B, H, L_Q, D = Qb.shape
    L_K = Kb.shape[2]
    tk = _pick_k_tile(L_K)
    n_kt = L_K // tk
    kernel = functools.partial(_m_kernel, inv_sample_k=1.0 / float(sample_k))
    m = pl.pallas_call(
        kernel,
        out_shape=jax.ShapeDtypeStruct((B, H, 1, L_Q), jnp.float32),
        grid=(B, H, n_kt),
        in_specs=[
            pl.BlockSpec((1, 1, L_Q, D), lambda b, h, kt: (b, h, 0, 0)),
            pl.BlockSpec((1, 1, tk, D), lambda b, h, kt: (b, h, kt, 0)),
            pl.BlockSpec((tk, L_Q), lambda b, h, kt: (kt, 0)),
        ],
        out_specs=pl.BlockSpec((1, 1, 1, L_Q), lambda b, h, kt: (b, h, 0, 0)),
        scratch_shapes=[pltpu.VMEM((1, L_Q), jnp.float32),
                        pltpu.VMEM((1, L_Q), jnp.float32)],
        compiler_params=pltpu.CompilerParams(
            dimension_semantics=("parallel", "parallel", "arbitrary"),
            vmem_limit_bytes=_VMEM_LIMIT),
    )(Qb, Kb, cnt_t)
    return m[:, :, 0, :]          # (B, H, L_Q)


# --------------------------------------------------------------------------- #
# Kernel 2: top-u scores -> causal ProbMask -> softmax -> attn @ V
# (all heads of one batch element per grid step; MXU matmuls in bf16)
# --------------------------------------------------------------------------- #
def _ctx_kernel(q_ref, k_ref, v_ref, idx_ref, out_ref, *, mask_flag):
    q = q_ref[0]                   # (H, u,   D) bf16, already scaled by 1/sqrt(D)
    k = k_ref[0]                   # (H, L_K, D) bf16
    v = v_ref[0]                   # (H, L_V, D) bf16

    s = jnp.einsum('hud,hkd->huk', q, k,
                   preferred_element_type=jnp.float32)       # f32 scores

    if mask_flag:
        idx = idx_ref[0]                                     # (H, u, 1) int32
        key_pos = jax.lax.broadcasted_iota(jnp.int32, s.shape, 2)
        s = jnp.where(key_pos > idx, _NEG, s)                # causal ProbMask

    row_max = jnp.max(s, axis=-1, keepdims=True)
    p = jnp.exp(s - row_max)
    denom = jnp.sum(p, axis=-1, keepdims=True)
    attn = p * pl.reciprocal(denom, approx=True)             # EUP slot (cheap)
    ctx = jnp.einsum('huk,hkd->hud', attn.astype(v.dtype), v,
                     preferred_element_type=jnp.float32)
    out_ref[0] = ctx.astype(out_ref.dtype)


def _compute_top_context(Q_top, Kb, Vb, idx_col, *, mask_flag):
    B, H, u, D = Q_top.shape
    L_K = Kb.shape[2]
    L_V = Vb.shape[2]
    kernel = functools.partial(_ctx_kernel, mask_flag=mask_flag)
    return pl.pallas_call(
        kernel,
        out_shape=jax.ShapeDtypeStruct((B, H, u, D), jnp.float32),
        grid=(B,),
        in_specs=[
            pl.BlockSpec((1, H, u, D), lambda b: (b, 0, 0, 0)),
            pl.BlockSpec((1, H, L_K, D), lambda b: (b, 0, 0, 0)),
            pl.BlockSpec((1, H, L_V, D), lambda b: (b, 0, 0, 0)),
            pl.BlockSpec((1, H, u, 1), lambda b: (b, 0, 0, 0)),
        ],
        out_specs=pl.BlockSpec((1, H, u, D), lambda b: (b, 0, 0, 0)),
        compiler_params=pltpu.CompilerParams(
            dimension_semantics=("parallel",),
            vmem_limit_bytes=_VMEM_LIMIT),
    )(Q_top, Kb, Vb, idx_col)


# --------------------------------------------------------------------------- #
# Module wrapper (mirrors the PyTorch ProbAttention.forward)
# --------------------------------------------------------------------------- #
class ProbAttention:
    """JAX/Pallas equivalent of Informer's ProbAttention (inference forward)."""

    def __init__(self, mask_flag=True, factor=5, scale=None,
                 attention_dropout=0.1, output_attention=False):
        self.mask_flag = mask_flag
        self.factor = factor
        self.scale = scale
        self.output_attention = output_attention
        # TODO(synk): attention dropout is the identity here (eval / inference path).
        del attention_dropout

    def __call__(self, queries, keys, values, attn_mask=None, *, sample_rng=None):
        # queries, keys, values: (B, L, H, D)
        B, L_Q, H, D = queries.shape
        _, L_K, _, _ = keys.shape
        L_V = values.shape[1]

        Q = jnp.transpose(queries, (0, 2, 1, 3))     # (B, H, L_Q, D) f32
        K = jnp.transpose(keys, (0, 2, 1, 3))        # (B, H, L_K, D)
        V = jnp.transpose(values, (0, 2, 1, 3))      # (B, H, L_V, D)
        Qb = Q.astype(jnp.bfloat16)
        Kb = K.astype(jnp.bfloat16)
        Vb = V.astype(jnp.bfloat16)

        U_part = min(self.factor * int(math.ceil(math.log(L_K))), L_K)
        u = min(self.factor * int(math.ceil(math.log(L_Q))), L_Q)

        if sample_rng is None:
            sample_rng = jax.random.PRNGKey(0)
        # Same random key indices for every (batch, head), as in torch.randint.
        index_sample = jax.random.randint(sample_rng, (L_Q, U_part), 0, L_K)
        # cnt_t[k, q] = #times key k was sampled for query q (duplicates counted),
        # built via scatter-add (no (L_Q, U_part, L_K) intermediate), stored bf16.
        cnt_t = jnp.zeros((L_K, L_Q), jnp.float32).at[
            index_sample, jnp.arange(L_Q)[:, None]].add(1.0).astype(jnp.bfloat16)

        M = _compute_sparsity_measure(Qb, Kb, cnt_t, U_part)        # (B, H, L_Q)
        _, index = jax.lax.top_k(M, u)                              # (B, H, u)

        scale = self.scale if self.scale is not None else 1.0 / math.sqrt(D)
        # Gather the active queries in f32, fold the softmax scale in, cast to bf16.
        Q_top = jnp.take_along_axis(Q, index[..., None], axis=2)    # (B, H, u, D)
        Q_top_b = (Q_top * scale).astype(jnp.bfloat16)
        idx_col = index[..., None].astype(jnp.int32)                # (B, H, u, 1)

        if self.mask_flag:
            assert L_Q == L_V, "masked ProbAttention requires L_Q == L_V"

        ctx_top = _compute_top_context(Q_top_b, Kb, Vb, idx_col,
                                       mask_flag=self.mask_flag)    # (B, H, u, D) f32

        # Initial context (f32, outside the kernel) + scatter of the u rows.
        if self.mask_flag:
            init_ctx = jnp.cumsum(V, axis=2)
        else:
            init_ctx = jnp.broadcast_to(V.mean(axis=2, keepdims=True),
                                        (B, H, L_Q, D))
        b_idx = jnp.arange(B)[:, None, None]
        h_idx = jnp.arange(H)[None, :, None]
        context = init_ctx.at[b_idx, h_idx, index].set(ctx_top)     # (B, H, L_Q, D)
        context = jnp.transpose(context, (0, 2, 1, 3))              # (B, L_Q, H, D)

        # TODO(synk): output_attention=True (dense attention-map reconstruction)
        # is not produced by the kernel; like the PyTorch default path we return None.
        return context, None


# --------------------------------------------------------------------------- #
# Pure-JAX reference (transcription of the PyTorch module; matmul operands cast
# to bf16 / f32 accumulation to mirror the kernel's MXU precision so the
# data-dependent top-k selection agrees).
# --------------------------------------------------------------------------- #
def _reference_prob_attention(queries, keys, values, *, sample_rng, factor,
                              scale, mask_flag):
    B, L_Q, H, D = queries.shape
    _, L_K, _, _ = keys.shape
    Q = jnp.transpose(queries, (0, 2, 1, 3))
    K = jnp.transpose(keys, (0, 2, 1, 3))
    V = jnp.transpose(values, (0, 2, 1, 3))
    Qb = Q.astype(jnp.bfloat16)
    Kb = K.astype(jnp.bfloat16)
    Vb = V.astype(jnp.bfloat16)

    U_part = min(factor * int(math.ceil(math.log(L_K))), L_K)
    u = min(factor * int(math.ceil(math.log(L_Q))), L_Q)

    index_sample = jax.random.randint(sample_rng, (L_Q, U_part), 0, L_K)
    K_sample = Kb[:, :, index_sample, :]                            # (B,H,L_Q,U_part,D)
    Q_K_sample = jnp.einsum('bhqd,bhqsd->bhqs', Qb, K_sample,
                            preferred_element_type=jnp.float32)
    M = Q_K_sample.max(axis=-1) - Q_K_sample.mean(axis=-1)
    _, index = jax.lax.top_k(M, u)

    scale_v = scale if scale is not None else 1.0 / math.sqrt(D)
    Q_top = jnp.take_along_axis(Q, index[..., None], axis=2)
    Q_top_b = (Q_top * scale_v).astype(jnp.bfloat16)
    scores = jnp.einsum('bhud,bhkd->bhuk', Q_top_b, Kb,
                        preferred_element_type=jnp.float32)
    if mask_flag:
        key_pos = jnp.arange(L_K)[None, None, None, :]
        scores = jnp.where(key_pos > index[..., None], -jnp.inf, scores)
    attn = jax.nn.softmax(scores, axis=-1)
    ctx_top = jnp.einsum('bhuk,bhkd->bhud', attn.astype(jnp.bfloat16), Vb,
                         preferred_element_type=jnp.float32)

    if mask_flag:
        context = jnp.cumsum(V, axis=2)
    else:
        context = jnp.broadcast_to(V.mean(axis=2, keepdims=True), (B, H, L_Q, D))

    b_idx = jnp.arange(B)[:, None, None]
    h_idx = jnp.arange(H)[None, :, None]
    context = context.at[b_idx, h_idx, index].set(ctx_top)
    return jnp.transpose(context, (0, 2, 1, 3))


if __name__ == "__main__":
    B, L, H, D = 2, 32, 4, 32
    key = jax.random.PRNGKey(0)
    kq, kk, kv, ks = jax.random.split(key, 4)
    queries = jax.random.normal(kq, (B, L, H, D), dtype=jnp.float32)
    keys = jax.random.normal(kk, (B, L, H, D), dtype=jnp.float32)
    values = jax.random.normal(kv, (B, L, H, D), dtype=jnp.float32)

    for mask_flag in (True, False):
        module = ProbAttention(mask_flag=mask_flag, factor=5)
        ctx, attn = module(queries, keys, values, None, sample_rng=ks)
        ctx = jax.block_until_ready(ctx)
        assert ctx.shape == (B, L, H, D), ctx.shape
        assert ctx.dtype == jnp.float32
        assert attn is None

        ref = _reference_prob_attention(queries, keys, values, sample_rng=ks,
                                        factor=5, scale=None, mask_flag=mask_flag)
        max_diff = float(jnp.max(jnp.abs(ctx - ref)))
        # bf16 MXU operands + approx-reciprocal softmax -> compare at bf16 precision.
        assert jnp.allclose(ctx, ref, atol=2e-2, rtol=2e-2), (
            f"mismatch vs reference (mask_flag={mask_flag}), "
            f"max abs diff = {max_diff}")

    print("KERNEL_OK")
</pallas_src>

<mosaic_0001>
module attributes {stable_mosaic.version = 11 : i64} {
  func.func @_m_kernel(%arg0: i32, %arg1: i32, %arg2: i32, %arg3: memref<1x1x32x32xbf16, #tpu.memory_space<vmem>>, %arg4: memref<1x1x32x32xbf16, #tpu.memory_space<vmem>>, %arg5: memref<32x32xbf16, #tpu.memory_space<vmem>>, %arg6: memref<1x1x1x32xf32, #tpu.memory_space<vmem>>, %arg7: memref<1x32xf32, #tpu.memory_space<vmem>>, %arg8: memref<1x32xf32, #tpu.memory_space<vmem>>) attributes {dimension_semantics = [#tpu.dimension_semantics<parallel>, #tpu.dimension_semantics<parallel>, #tpu.dimension_semantics<arbitrary>], iteration_bounds = array<i64: 2, 4, 1>, scalar_prefetch = 0 : i64, scratch_operands = 2 : i64, tpu.core_type = #tpu.core_type<tc>, window_params = [{transform_indices = @transform_0, window_bounds = array<i64: 1, 1, 32, 32>}, {transform_indices = @transform_1, window_bounds = array<i64: 1, 1, 32, 32>}, {transform_indices = @transform_2, window_bounds = array<i64: 32, 32>}, {transform_indices = @transform_3, window_bounds = array<i64: 1, 1, 1, 32>}]} {
    %c0_i32 = arith.constant 0 : i32
    %0 = arith.cmpi eq, %arg2, %c0_i32 : i32
    %1 = arith.extui %0 : i1 to i32
    %c0_i32_0 = arith.constant 0 : i32
    %2 = arith.cmpi ne, %1, %c0_i32_0 : i32
    scf.if %2 {
      %cst_24 = arith.constant -1.000000e+30 : f32
      %28 = vector.broadcast %cst_24 : f32 to vector<1x32xf32>
      %c0_25 = arith.constant 0 : index
      %c0_26 = arith.constant 0 : index
      %29 = vector.load %arg7[%c0_25, %c0_26] : memref<1x32xf32, #tpu.memory_space<vmem>>, vector<1x32xf32>
      tpu.vector_store %arg7[%c0_25, %c0_26], %28 {strides = array<i32>} : memref<1x32xf32, #tpu.memory_space<vmem>>, vector<1x32xf32>,
      %cst_27 = arith.constant 0.000000e+00 : f32
      %30 = vector.broadcast %cst_27 : f32 to vector<1x32xf32>
      %c0_28 = arith.constant 0 : index
      %c0_29 = arith.constant 0 : index
      %31 = vector.load %arg8[%c0_28, %c0_29] : memref<1x32xf32, #tpu.memory_space<vmem>>, vector<1x32xf32>
      tpu.vector_store %arg8[%c0_28, %c0_29], %30 {strides = array<i32>} : memref<1x32xf32, #tpu.memory_space<vmem>>, vector<1x32xf32>,
    } else {
    }
    %c0 = arith.constant 0 : index
    %c0_1 = arith.constant 0 : index
    %c0_2 = arith.constant 0 : index
    %c0_3 = arith.constant 0 : index
    %3 = vector.load %arg3[%c0, %c0_1, %c0_2, %c0_3] : memref<1x1x32x32xbf16, #tpu.memory_space<vmem>>, vector<1x1x32x32xbf16>
    %4 = vector.shape_cast %3 : vector<1x1x32x32xbf16> to vector<32x32xbf16>
    %c0_4 = arith.constant 0 : index
    %c0_5 = arith.constant 0 : index
    %c0_6 = arith.constant 0 : index
    %c0_7 = arith.constant 0 : index
    %5 = vector.load %arg4[%c0_4, %c0_5, %c0_6, %c0_7] : memref<1x1x32x32xbf16, #tpu.memory_space<vmem>>, vector<1x1x32x32xbf16>
    %6 = vector.shape_cast %5 : vector<1x1x32x32xbf16> to vector<32x32xbf16>
    %c0_8 = arith.constant 0 : index
    %c0_9 = arith.constant 0 : index
    %7 = vector.load %arg5[%c0_8, %c0_9] : memref<32x32xbf16, #tpu.memory_space<vmem>>, vector<32x32xbf16>
    %8 = arith.extf %7 : vector<32x32xbf16> to vector<32x32xf32>
    %cst = arith.constant dense<0.000000e+00> : vector<32x32xf32>
    %9 = tpu.matmul %6, %4, %cst {dimension_numbers = #tpu.dot_dimension_numbers<[1], [1], [0], [0], [0, 0, 1, 0], [], []>} : vector<32x32xbf16>, vector<32x32xbf16>, vector<32x32xf32> -> vector<32x32xf32>
    %c0_10 = arith.constant 0 : index
    %c0_11 = arith.constant 0 : index
    %10 = vector.load %arg7[%c0_10, %c0_11] : memref<1x32xf32, #tpu.memory_space<vmem>>, vector<1x32xf32>
    %cst_12 = arith.constant 0.000000e+00 : f32
    %11 = vector.broadcast %cst_12 : f32 to vector<32x32xf32>
    %12 = arith.cmpf ogt, %8, %11 : vector<32x32xf32>
    %cst_13 = arith.constant -1.000000e+30 : f32
    %13 = vector.broadcast %cst_13 : f32 to vector<32x32xf32>
    %14 = arith.select %12, %9, %13 : vector<32x32xi1>, vector<32x32xf32>
    %cst_14 = arith.constant dense<0xFF800000> : vector<32xf32>
    %15 = vector.multi_reduction <maximumf>, %14, %cst_14 [0] : vector<32x32xf32> to vector<32xf32>
    %16 = vector.shape_cast %15 : vector<32xf32> to vector<1x32xf32>
    %17 = arith.maximumf %10, %16 : vector<1x32xf32>
    %c0_15 = arith.constant 0 : index
    %c0_16 = arith.constant 0 : index
    %18 = vector.load %arg7[%c0_15, %c0_16] : memref<1x32xf32, #tpu.memory_space<vmem>>, vector<1x32xf32>
    tpu.vector_store %arg7[%c0_15, %c0_16], %17 {strides = array<i32>} : memref<1x32xf32, #tpu.memory_space<vmem>>, vector<1x32xf32>,
    %c0_17 = arith.constant 0 : index
    %c0_18 = arith.constant 0 : index
    %19 = vector.load %arg8[%c0_17, %c0_18] : memref<1x32xf32, #tpu.memory_space<vmem>>, vector<1x32xf32>
    %20 = arith.mulf %9, %8 : vector<32x32xf32>
    %cst_19 = arith.constant dense<0.000000e+00> : vector<32xf32>
    %21 = vector.multi_reduction <add>, %20, %cst_19 [0] : vector<32x32xf32> to vector<32xf32>
    %22 = vector.shape_cast %21 : vector<32xf32> to vector<1x32xf32>
    %23 = arith.addf %19, %22 : vector<1x32xf32>
    %c0_20 = arith.constant 0 : index
    %c0_21 = arith.constant 0 : index
    %24 = vector.load %arg8[%c0_20, %c0_21] : memref<1x32xf32, #tpu.memory_space<vmem>>, vector<1x32xf32>
    tpu.vector_store %arg8[%c0_20, %c0_21], %23 {strides = array<i32>} : memref<1x32xf32, #tpu.memory_space<vmem>>, vector<1x32xf32>,
    %c0_i32_22 = arith.constant 0 : i32
    %25 = arith.cmpi eq, %arg2, %c0_i32_22 : i32
    %26 = arith.extui %25 : i1 to i32
    %c0_i32_23 = arith.constant 0 : i32
    %27 = arith.cmpi ne, %26, %c0_i32_23 : i32
    scf.if %27 {
      %c0_24 = arith.constant 0 : index
      %c0_25 = arith.constant 0 : index
      %28 = vector.load %arg7[%c0_24, %c0_25] : memref<1x32xf32, #tpu.memory_space<vmem>>, vector<1x32xf32>
      %c0_26 = arith.constant 0 : index
      %c0_27 = arith.constant 0 : index
      %29 = vector.load %arg8[%c0_26, %c0_27] : memref<1x32xf32, #tpu.memory_space<vmem>>, vector<1x32xf32>
      %cst_28 = arith.constant 5.000000e-02 : f32
      %30 = vector.broadcast %cst_28 : f32 to vector<1x32xf32>
      %31 = arith.mulf %29, %30 : vector<1x32xf32>
      %32 = arith.subf %28, %31 : vector<1x32xf32>
      %c0_29 = arith.constant 0 : index
      %c0_30 = arith.constant 0 : index
      %c0_31 = arith.constant 0 : index
      %c0_32 = arith.constant 0 : index
      %33 = vector.load %arg6[%c0_29, %c0_30, %c0_31, %c0_32] : memref<1x1x1x32xf32, #tpu.memory_space<vmem>>, vector<1x1x1x32xf32>
      %34 = vector.shape_cast %33 : vector<1x1x1x32xf32> to vector<1x32xf32>
      %35 = vector.shape_cast %32 : vector<1x32xf32> to vector<1x1x1x32xf32>
      tpu.vector_store %arg6[%c0_29, %c0_30, %c0_31, %c0_32], %35 {strides = array<i32>} : memref<1x1x1x32xf32, #tpu.memory_space<vmem>>, vector<1x1x1x32xf32>,
    } else {
    }
    return
  }
  func.func @transform_0(%arg0: i32, %arg1: i32, %arg2: i32) -> (i32, i32, i32, i32) {
    %c0_i32 = arith.constant 0 : i32
    %c0_i32_0 = arith.constant 0 : i32
    %c0_i32_1 = arith.constant 0 : i32
    return %arg0, %arg1, %c0_i32, %c0_i32_0 : i32, i32, i32, i32
  }
  func.func @transform_1(%arg0: i32, %arg1: i32, %arg2: i32) -> (i32, i32, i32, i32) {
    %c0_i32 = arith.constant 0 : i32
    %c0_i32_0 = arith.constant 0 : i32
    return %arg0, %arg1, %arg2, %c0_i32 : i32, i32, i32, i32
  }
  func.func @transform_2(%arg0: i32, %arg1: i32, %arg2: i32) -> (i32, i32) {
    %c0_i32 = arith.constant 0 : i32
    %c0_i32_0 = arith.constant 0 : i32
    return %arg2, %c0_i32 : i32, i32
  }
  func.func @transform_3(%arg0: i32, %arg1: i32, %arg2: i32) -> (i32, i32, i32, i32) {
    %c0_i32 = arith.constant 0 : i32
    %c0_i32_0 = arith.constant 0 : i32
    %c0_i32_1 = arith.constant 0 : i32
    return %arg0, %arg1, %c0_i32, %c0_i32_0 : i32, i32, i32, i32
  }
}

</mosaic_0001>

<llo_original>
// kernel: tpu_custom_call.1
$region0: #{tpu_custom_call.1}
  #allocation0 [shape = 'u32[]', space=smem, size = 0x4, offset = 0x4, fixed_abs, tag = 'smem constant byte address 0x4 - core index']
  #allocation1 [shape = 'u32[72,128]{1,0:T(1,128)}', space=vmem, size = 0x9000, scoped, tag = 'internal scratch']
  #allocation2 [shape = 'f32[1,32]{1,0:T(1,128)}', space=vmem, size = 0x200, scoped, tag = 'scratch operand']
  #allocation3 [shape = 'f32[1,32]{1,0:T(1,128)}', space=vmem, size = 0x200, scoped, tag = 'scratch operand']
  %s0 = inlined_call_operand.hbm [shape: bf16[2,4,32,32], index: 0, kind: input, shape index: {}]
  %s1 = inlined_call_operand.hbm [shape: bf16[2,4,32,32], index: 1, kind: input, shape index: {}]
  %s2 = inlined_call_operand.hbm [shape: bf16[32,32], index: 2, kind: input, shape index: {}]
  %s3 = inlined_call_operand.hbm [shape: f32[2,4,1,32], index: 3, kind: output, shape index: {}]
  %s4 = sld [smem:[#allocation0]]
  $region65: #{tpu_custom_call.1} parent=0
    _
  %s6 = ssub.s32 1, %s4
  %s7 = scalar_select 0, %s6, %s4
  $region1: #{tpu_custom_call.1} parent=0
    #allocation4 [shape = 'u8[16384]{0}', space=vmem, size = 0x4000, scoped, tag = 'input window, operand 0']
    #allocation5 [shape = 's32[2]{0}', space=sflag, size = 0x8, scoped, tag = 'scoped memory for tpu_custom_call.1']
    #allocation6 [shape = 's32[2]{0}', space=sflag, size = 0x8, scoped, tag = 'scoped memory for tpu_custom_call.1']
    #allocation7 [shape = 'u8[16384]{0}', space=vmem, size = 0x4000, scoped, tag = 'input window, operand 1']
    #allocation8 [shape = 's32[2]{0}', space=sflag, size = 0x8, scoped, tag = 'scoped memory for tpu_custom_call.1']
    #allocation9 [shape = 'u8[8192]{0}', space=vmem, size = 0x2000, scoped, tag = 'input window, operand 2, single buffered']
    #allocation10 [shape = 'u8[1024]{0}', space=vmem, size = 0x400, scoped, tag = 'output window, operand 0']
    %8 = vsyncpa [#allocation5], 0
    %s9 = scalar_lea.sflag [#allocation5], 1
    %10 = vsyncpa %s9, 0
    %11 = vsyncpa [#allocation8], 0
    %s12 = scalar_lea.sflag [#allocation8], 1
    %13 = vsyncpa %s12, 0
    %14 = vsyncpa [#allocation6], 0
    %s15 = scalar_lea.sflag [#allocation6], 1
    %16 = vsyncpa %s15, 0
    loop: start=0, step=1, limit=10
    $region2: #{tpu_custom_call.1} parent=1 // loop_pre_header
      _
    $region3: #{tpu_custom_call.1} parent=1 // loop_header
      %s18 = sphi 0, %s22
      %p19 = scmp.ge.s32.totalorder %s18, 10
      %s25 = sphi 0, %s44
      %s26 = sphi 0, %s40
      %s27 = sphi 0, %s36
      %s28 = sphi 0, %s25
      %s29 = sphi 0, %s26
      %s30 = sphi 0, %s27
      %s31 = sphi 0, %s28
      %s32 = sphi 0, %s29
      %s33 = sphi 0, %s30
      %s49 = sphi 0, %s51
      %s52 = sphi 0, %s49
      %s53 = sphi 0, %s52
      %s69 = sphi 0, %s53
      %s79 = sphi 0, %s81
      %s82 = sphi 0, %s79
      %s83 = sphi 0, %s82
      %s99 = sphi 0, %s83
      %s105 = sphi 0, %s107
      %s108 = sphi 0, %s105
      %s109 = sphi 0, %s108
      %s125 = sphi 0, %s109
      %s133 = sphi 0, %s135
      %s136 = sphi 0, %s133
      %s137 = sphi 0, %s136
      %s153 = sphi 0, %s137
    $region4: #{tpu_custom_call.1} parent=1 // loop_header_branch
      %21 = sbr.rel (%p19) target = $region8
    $region5: #{tpu_custom_call.1} parent=1 // loop_body
      %s23 = ssub.s32 %s18, 1
      %s24 = ssub.s32 %s18, 2
      %s34 = sadd.s32 1, %s27
      %p35 = scmp.ge.s32.totalorder %s34, 1
      %s36 = scalar_select %p35, 0, %s34
      %s37 = sadd.s32 1, %s26
      %s38 = scalar_select %p35, %s37, %s26
      %p39 = scmp.ge.s32.totalorder %s38, 4
      %s40 = scalar_select %p39, 0, %s38
      %s41 = sadd.s32 1, %s25
      %s42 = scalar_select %p39, %s41, %s25
      %p43 = scmp.ge.s32.totalorder %s42, 2
      %s44 = scalar_select %p43, 0, %s42
      %s45 = ssub.s32 %s25, %s44
      %s46 = ssub.s32 %s26, %s40
      %s47 = sor.u32 %s45, %s46
      %p48 = scmp.eq.s32.totalorder %s47, 0
      %s50 = sadd.s32 %s49, 1
      %s51 = scalar_select %p48, %s49, %s50
      %p54 = pneg %p48
      %p55 = scmp.eq.s32.totalorder %s18, 7
      %p56 = por %p54, %p55
      %p57 = scmp.ne.s32.totalorder %s49, %s52
      %p58 = scmp.eq.s32.totalorder %s18, 0
      %p59 = por %p57, %p58
      %p60 = scmp.ne.s32.totalorder %s49, %s52
      %p61 = scmp.eq.s32.totalorder %s23, 7
      %p62 = por %p60, %p61
      %p63 = scmp.ne.s32.totalorder %s52, %s53
      %p64 = scmp.eq.s32.totalorder %s23, 0
      %p65 = por %p63, %p64
      %p66 = scmp.ne.s32.totalorder %s52, %s53
      %p67 = scmp.eq.s32.totalorder %s24, 7
      %p68 = por %p66, %p67
      %p70 = scmp.ne.s32.totalorder %s53, %s69
      %p71 = scmp.eq.s32.totalorder %s24, 0
      %p72 = por %p70, %p71
      %s73 = ssub.s32 %s25, %s44
      %s74 = ssub.s32 %s26, %s40
      %s75 = sor.u32 %s73, %s74
      %s76 = ssub.s32 %s27, %s36
      %s77 = sor.u32 %s75, %s76
      %p78 = scmp.eq.s32.totalorder %s77, 0
      %s80 = sadd.s32 %s79, 1
      %s81 = scalar_select %p78, %s79, %s80
      %p84 = pneg %p78
      %p85 = scmp.eq.s32.totalorder %s18, 7
      %p86 = por %p84, %p85
      %p87 = scmp.ne.s32.totalorder %s79, %s82
      %p88 = scmp.eq.s32.totalorder %s18, 0
      %p89 = por %p87, %p88
      %p90 = scmp.ne.s32.totalorder %s79, %s82
      %p91 = scmp.eq.s32.totalorder %s23, 7
      %p92 = por %p90, %p91
      %p93 = scmp.ne.s32.totalorder %s82, %s83
      %p94 = scmp.eq.s32.totalorder %s23, 0
      %p95 = por %p93, %p94
      %p96 = scmp.ne.s32.totalorder %s82, %s83
      %p97 = scmp.eq.s32.totalorder %s24, 7
      %p98 = por %p96, %p97
      %p100 = scmp.ne.s32.totalorder %s83, %s99
      %p101 = scmp.eq.s32.totalorder %s24, 0
      %p102 = por %p100, %p101
      %s103 = ssub.s32 %s27, %s36
      %p104 = scmp.eq.s32.totalorder %s103, 0
      %s106 = sadd.s32 %s105, 1
      %s107 = scalar_select %p104, %s105, %s106
      %p110 = pneg %p104
      %p111 = scmp.eq.s32.totalorder %s18, 7
      %p112 = por %p110, %p111
      %p113 = scmp.ne.s32.totalorder %s105, %s108
      %p114 = scmp.eq.s32.totalorder %s18, 0
      %p115 = por %p113, %p114
      %p116 = scmp.ne.s32.totalorder %s105, %s108
      %p117 = scmp.eq.s32.totalorder %s23, 7
      %p118 = por %p116, %p117
      %p119 = scmp.ne.s32.totalorder %s108, %s109
      %p120 = scmp.eq.s32.totalorder %s23, 0
      %p121 = por %p119, %p120
      %p122 = scmp.ne.s32.totalorder %s108, %s109
      %p123 = scmp.eq.s32.totalorder %s24, 7
      %p124 = por %p122, %p123
      %p126 = scmp.ne.s32.totalorder %s109, %s125
      %p127 = scmp.eq.s32.totalorder %s24, 0
      %p128 = por %p126, %p127
      %s129 = ssub.s32 %s25, %s44
      %s130 = ssub.s32 %s26, %s40
      %s131 = sor.u32 %s129, %s130
      %p132 = scmp.eq.s32.totalorder %s131, 0
      %s134 = sadd.s32 %s133, 1
      %s135 = scalar_select %p132, %s133, %s134
      %p138 = pneg %p132
      %p139 = scmp.eq.s32.totalorder %s18, 7
      %p140 = por %p138, %p139
      %p141 = scmp.ne.s32.totalorder %s133, %s136
      %p142 = scmp.eq.s32.totalorder %s18, 0
      %p143 = por %p141, %p142
      %p144 = scmp.ne.s32.totalorder %s133, %s136
      %p145 = scmp.eq.s32.totalorder %s23, 7
      %p146 = por %p144, %p145
      %p147 = scmp.ne.s32.totalorder %s136, %s137
      %p148 = scmp.eq.s32.totalorder %s23, 0
      %p149 = por %p147, %p148
      %p150 = scmp.ne.s32.totalorder %s136, %s137
      %p151 = scmp.eq.s32.totalorder %s24, 7
      %p152 = por %p150, %p151
      %p154 = scmp.ne.s32.totalorder %s137, %s153
      %p155 = scmp.eq.s32.totalorder %s24, 0
      %p156 = por %p154, %p155
      %p157 = scmp.le.s32.totalorder 1, %s18
      %p158 = scmp.lt.s32.totalorder %s18, 9
      %p159 = pnand %p157, %p158
      %p160 = pneg %p159
      // Predicated region
      $region9: #{tpu_custom_call.1} parent=5 // pred_check
        _
      $region10: #{tpu_custom_call.1} parent=5 // pred_check_branch
        %162 = sbr.rel (%p159) target = $region12
      $region11: #{tpu_custom_call.1} parent=5 // pred_region
        %s163 = ssub.s32 %s18, 1
        // Predicated region
        $region13: #{tpu_custom_call.1} parent=11 // pred_check
          %p164 = pneg %p121
        $region14: #{tpu_custom_call.1} parent=11 // pred_check_branch
          %166 = sbr.rel (%p164) target = $region16
        $region15: #{tpu_custom_call.1} parent=11 // pred_region
          %s167 = smul.u32 4, %s30
          %169 = vsyncadd [#allocation8], 0
          %s170 = smul.addr %s167, 4
          %s171 = scalar_lea.hbm %s2, %s170
          %s172 = sshll.u32 %s171, 4
          %s173 = int_to_ptr.hbm [resolvable:$true] %s172
          %s174 = sshll.u32 [#allocation9], 4
          %s175 = int_to_ptr.vmem [resolvable:$true] %s174
          %180 = dma.hbm_to_vmem [thread:$0]  %s173, 256, %s175, [#allocation8], 64, 64, 4
        $region16: #{tpu_custom_call.1} parent=11 // pred_fallthru
          _
      $region12: #{tpu_custom_call.1} parent=5 // pred_fallthru
        _
      %p181 = scmp.lt.s32.totalorder %s18, 8
      // Predicated region
      $region17: #{tpu_custom_call.1} parent=5 // pred_check
        %p182 = pneg %p181
      $region18: #{tpu_custom_call.1} parent=5 // pred_check_branch
        %184 = sbr.rel (%p182) target = $region20
      $region19: #{tpu_custom_call.1} parent=5 // pred_region
        // Predicated region
        $region21: #{tpu_custom_call.1} parent=19 // pred_check
          %p185 = pneg %p59
        $region22: #{tpu_custom_call.1} parent=19 // pred_check_branch
          %187 = sbr.rel (%p185) target = $region24
        $region23: #{tpu_custom_call.1} parent=19 // pred_region
          %s188 = sand.u32 %s49, 1
          %s189 = scalar_lea.sflag [#allocation5], %s188
          %s190 = sand.u32 %s49, 1
          %s191 = smul.addr %s190, 16
          %s192 = scalar_lea.vmem [#allocation4], %s191
          %194 = vsyncadd %s189, 0
          %s195 = smul.addr %s26, 4
          %s196 = smul.addr %s25, 16
          %s197 = sadd.s32 %s195, %s196
          %s198 = smul.addr %s197, 4
          %s199 = scalar_lea.hbm %s0, %s198
          %s200 = sshll.u32 %s199, 4
          %s201 = int_to_ptr.hbm [resolvable:$true] %s200
          %s202 = sshll.u32 %s192, 4
          %s203 = int_to_ptr.vmem [resolvable:$true] %s202
          %208 = dma.hbm_to_vmem [thread:$0]  %s201, 256, %s203, %s189, 64, 64, 4
        $region24: #{tpu_custom_call.1} parent=19 // pred_fallthru
          _
        // Predicated region
        $region25: #{tpu_custom_call.1} parent=19 // pred_check
          %p209 = pneg %p89
        $region26: #{tpu_custom_call.1} parent=19 // pred_check_branch
          %211 = sbr.rel (%p209) target = $region28
        $region27: #{tpu_custom_call.1} parent=19 // pred_region
          %s212 = sand.u32 %s18, 1
          %s213 = scalar_lea.sflag [#allocation8], %s212
          %s214 = sand.u32 %s79, 1
          %s215 = smul.addr %s214, 16
          %s216 = scalar_lea.vmem [#allocation7], %s215
          %s217 = smul.u32 4, %s27
          %219 = vsyncadd %s213, 0
          %s220 = smul.addr %s26, 4
          %s221 = sadd.s32 %s217, %s220
          %s222 = smul.addr %s25, 16
          %s223 = sadd.s32 %s221, %s222
          %s224 = smul.addr %s223, 4
          %s225 = scalar_lea.hbm %s1, %s224
          %s226 = sshll.u32 %s225, 4
          %s227 = int_to_ptr.hbm [resolvable:$true] %s226
          %s228 = sshll.u32 %s216, 4
          %s229 = int_to_ptr.vmem [resolvable:$true] %s228
          %234 = dma.hbm_to_vmem [thread:$0]  %s227, 256, %s229, %s213, 64, 64, 4
        $region28: #{tpu_custom_call.1} parent=19 // pred_fallthru
          _
      $region20: #{tpu_custom_call.1} parent=5 // pred_fallthru
        _
      %p235 = scmp.le.s32.totalorder 1, %s18
      %p236 = scmp.lt.s32.totalorder %s18, 9
      %p237 = pnand %p235, %p236
      %p238 = pneg %p237
      // Predicated region
      $region29: #{tpu_custom_call.1} parent=5 // pred_check
        _
      $region30: #{tpu_custom_call.1} parent=5 // pred_check_branch
        %240 = sbr.rel (%p237) target = $region32
      $region31: #{tpu_custom_call.1} parent=5 // pred_region
        %s241 = ssub.s32 %s18, 1
        %s242 = sand.u32 %s52, 1
        %s243 = scalar_lea.sflag [#allocation5], %s242
        %s244 = sand.u32 %s52, 1
        %s245 = smul.addr %s244, 16
        %s246 = scalar_lea.vmem [#allocation4], %s245
        // Predicated region
        $region33: #{tpu_custom_call.1} parent=31 // pred_check
          %p247 = pneg %p65
        $region34: #{tpu_custom_call.1} parent=31 // pred_check_branch
          %249 = sbr.rel (%p247) target = $region36
        $region35: #{tpu_custom_call.1} parent=31 // pred_region
          %251 = dma.done %s243, 256
        $region36: #{tpu_custom_call.1} parent=31 // pred_fallthru
          _
        %s252 = sand.u32 %s23, 1
        %s253 = scalar_lea.sflag [#allocation8], %s252
        %s254 = sand.u32 %s82, 1
        %s255 = smul.addr %s254, 16
        %s256 = scalar_lea.vmem [#allocation7], %s255
        // Predicated region
        $region37: #{tpu_custom_call.1} parent=31 // pred_check
          %p257 = pneg %p95
        $region38: #{tpu_custom_call.1} parent=31 // pred_check_branch
          %259 = sbr.rel (%p257) target = $region40
        $region39: #{tpu_custom_call.1} parent=31 // pred_region
          %261 = dma.done %s253, 256
        $region40: #{tpu_custom_call.1} parent=31 // pred_fallthru
          _
        // Predicated region
        $region41: #{tpu_custom_call.1} parent=31 // pred_check
          %p262 = pneg %p121
        $region42: #{tpu_custom_call.1} parent=31 // pred_check_branch
          %264 = sbr.rel (%p262) target = $region44
        $region43: #{tpu_custom_call.1} parent=31 // pred_region
          %266 = dma.done [#allocation8], 256
        $region44: #{tpu_custom_call.1} parent=31 // pred_fallthru
          _
        %s267 = sand.u32 %s52, 1
        %s268 = scalar_lea.sflag [#allocation5], %s267
        %s269 = sand.u32 %s52, 1
        %s270 = smul.addr %s269, 16
        %s271 = scalar_lea.vmem [#allocation4], %s270
        %p272 = pneg %p65
        %p273 = pneg %p62
        %s274 = sand.u32 %s23, 1
        %s275 = scalar_lea.sflag [#allocation8], %s274
        %s276 = sand.u32 %s82, 1
        %s277 = smul.addr %s276, 16
        %s278 = scalar_lea.vmem [#allocation7], %s277
        %p279 = pneg %p95
        %p280 = pneg %p92
        %p281 = pneg %p121
        %p282 = pneg %p118
        %p283 = pneg %p149
        %p284 = pneg %p146
        %s285 = sand.u32 %s136, 1
        %s286 = scalar_lea.sflag [#allocation6], %s285
        %s287 = sand.u32 %s136, 1
        %s288 = scalar_lea.vmem [#allocation10], %s287
        %s289 = smul.u32 4, %s30
        %s290 = smul.u32 4, %s30
        %p292 = scmp.eq.s32.totalorder %s30, 0
        // Predicated region
        $region45: #{tpu_custom_call.1} parent=31 // pred_check
          %p293 = pneg %p292
        $region46: #{tpu_custom_call.1} parent=31 // pred_check_branch
          %295 = sbr.rel (%p293) target = $region48
        $region47: #{tpu_custom_call.1} parent=31 // pred_region
          %vm296 = vcmask 253952
          %297 = vst.msk [vmem:[#allocation2] sm:$0x1] %vm296, -1e+30
          %298 = vst.msk [vmem:[#allocation3] sm:$0x1] %vm296, 0.0
        $region48: #{tpu_custom_call.1} parent=31 // pred_fallthru
          _
        %v299 = vld [vmem:[%s246] sm:$0xf]
        %v300 = vld [vmem:[%s246 + $0x4] sm:$0xf]
        %v301 = vld [vmem:[%s246 + $0x8] sm:$0xf]
        %v302 = vld [vmem:[%s246 + $0xc] sm:$0xf]
        %v303 = vld [vmem:[%s256] sm:$0xf]
        %v304 = vld [vmem:[%s256 + $0x4] sm:$0xf]
        %v305 = vld [vmem:[%s256 + $0x8] sm:$0xf]
        %v306 = vld [vmem:[%s256 + $0xc] sm:$0xf]
        %v307 = vld [vmem:[#allocation9] sm:$0xf]
        %v308 = vld [vmem:[#allocation9 + $0x4] sm:$0xf]
        %v309 = vld [vmem:[#allocation9 + $0x8] sm:$0xf]
        %v310 = vld [vmem:[#allocation9 + $0xc] sm:$0xf]
        %v311 = vunpack.c.l.bf16 %v307
        %v312 = vunpack.c.l.bf16 %v308
        %v313 = vunpack.c.l.bf16 %v309
        %v314 = vunpack.c.l.bf16 %v310
        %v319 = vunpack.c.l.b16 %v303
        %v320 = vunpack.c.l.b16 %v304
        %v321 = vunpack.c.l.b16 %v305
        %v322 = vunpack.c.l.b16 %v306
        %v323 = vpack.c.b16 %v320, %v319
        %v324 = vpack.c.b16 %v322, %v321
        %v329 = vunpack.c.l.b16 %v299
        %v330 = vunpack.c.l.b16 %v300
        %v331 = vunpack.c.l.b16 %v301
        %v332 = vunpack.c.l.b16 %v302
        %v333 = vpack.c.b16 %v330, %v329
        %v334 = vpack.c.b16 %v332, %v331
        %vm335 = vcmask 261120
        %v337 = vsel %vm335, %v323, 0
        %v340 = vsel %vm335, %v324, 0
        %v343 = vsel %vm335, %v333, 0
        %v346 = vsel %vm335, %v334, 0
        %348 = vmatpush.bf16.xpose.msra.mxu0 0
        %349 = vmatpush.bf16.xpose.msra.mxu0 0
        %350 = vmatpush.bf16.xpose.msra.mxu0 0
        %351 = vmatpush.bf16.xpose.msra.mxu0 0
        %352 = vmatpush.bf16.xpose.msra.mxu0 0
        %353 = vmatpush.bf16.xpose.msra.mxu0 0
        %354 = vmatpush.bf16.xpose.msra.mxu0 %v346
        %355 = vmatpush.bf16.xpose.msra.mxu0 %v343
        %356 = vmatmul.bf16.gmra.mxu0 %v337
        %v357 = vpop.f32.mrf.mxu0
        %v358 = vadd.f32 0.0, %v357
        %v359 = vpop.f32.mrf.mxu0
        %v360 = vadd.f32 0.0, %v359
        %361 = vmatmul.bf16.gmra.mxu0 %v340
        %v362 = vpop.f32.mrf.mxu0
        %v363 = vadd.f32 0.0, %v362
        %v364 = vpop.f32.mrf.mxu0
        %v365 = vadd.f32 0.0, %v364
        %366 = vdwg.mxu0
        %v367 = vld [vmem:[#allocation2] sm:$0x1]
        %vm368 = vcmp.gt.f32.partialorder %v311, 0.0
        %vm369 = vcmp.gt.f32.partialorder %v312, 0.0
        %vm370 = vcmp.gt.f32.partialorder %v313, 0.0
        %vm371 = vcmp.gt.f32.partialorder %v314, 0.0
        %v372 = vsel %vm368, %v358, -1e+30
        %v373 = vsel %vm369, %v360, -1e+30
        %v374 = vsel %vm370, %v363, -1e+30
        %v375 = vsel %vm371, %v365, -1e+30
        %v376 = vsel %vm335, %v372, -inf
        %v377 = vsel %vm335, %v373, -inf
        %v378 = vsel %vm335, %v374, -inf
        %v379 = vsel %vm335, %v375, -inf
        %v380 = vmax.f32 %v376, %v377
        %v381 = vmax.f32 %v378, %v379
        %v382 = vmax.f32 %v380, %v381
        %v383 = vrot.slane %v382, 4
        %v384 = vmax.f32 %v382, %v383
        %v385 = vrot.slane %v384, 2
        %v386 = vmax.f32 %v384, %v385
        %v387 = vrot.slane %v386, 1
        %v388 = vmax.f32 %v386, %v387
        %v389 = vmax.f32 %v367, %v388
        %vm390 = vcmask 253952
        %391 = vst.msk [vmem:[#allocation2] sm:$0x1] %vm390, %v389
        %v392 = vld [vmem:[#allocation3] sm:$0x1]
        %v393 = vmul.f32 %v358, %v311
        %v394 = vmul.f32 %v360, %v312
        %v395 = vmul.f32 %v363, %v313
        %v396 = vmul.f32 %v365, %v314
        %v397 = vsel %vm335, %v393, 0.0
        %v398 = vsel %vm335, %v394, 0.0
        %v399 = vadd.f32 %v397, %v398
        %v400 = vsel %vm335, %v395, 0.0
        %v401 = vadd.f32 %v399, %v400
        %v402 = vsel %vm335, %v396, 0.0
        %v403 = vadd.f32 %v401, %v402
        %v404 = vrot.slane %v403, 4
        %v405 = vadd.f32 %v403, %v404
        %v406 = vrot.slane %v405, 2
        %v407 = vadd.f32 %v405, %v406
        %v408 = vrot.slane %v407, 1
        %v409 = vadd.f32 %v407, %v408
        %v410 = vadd.f32 %v392, %v409
        %411 = vst.msk [vmem:[#allocation3] sm:$0x1] %vm390, %v410
        // Predicated region
        $region49: #{tpu_custom_call.1} parent=31 // pred_check
          %p412 = pneg %p292
        $region50: #{tpu_custom_call.1} parent=31 // pred_check_branch
          %414 = sbr.rel (%p412) target = $region52
        $region51: #{tpu_custom_call.1} parent=31 // pred_region
          %v415 = vld [vmem:[#allocation2] sm:$0x1]
          %v416 = vld [vmem:[#allocation3] sm:$0x1]
          %v417 = vmul.f32 %v416, 0.05
          %v418 = vsub.f32 %v415, %v417
          %419 = vst.msk [vmem:[%s288] sm:$0x1] %vm390, %v418
        $region52: #{tpu_custom_call.1} parent=31 // pred_fallthru
          _
        %s420 = sand.u32 %s136, 1
        %s421 = scalar_lea.sflag [#allocation6], %s420
        %s422 = sand.u32 %s136, 1
        %s423 = scalar_lea.vmem [#allocation10], %s422
        // Predicated region
        $region53: #{tpu_custom_call.1} parent=31 // pred_check
          %p424 = pneg %p146
        $region54: #{tpu_custom_call.1} parent=31 // pred_check_branch
          %426 = sbr.rel (%p424) target = $region56
        $region55: #{tpu_custom_call.1} parent=31 // pred_region
          %428 = vsyncadd %s421, 0
          %s429 = smul.addr %s28, 4
          %s430 = sadd.s32 %s29, %s429
          %s431 = scalar_lea.hbm %s3, %s430
          %s433 = sshll.u32 %s423, 4
          %s434 = int_to_ptr.vmem [resolvable:$true] %s433
          %s435 = sshll.u32 %s431, 4
          %s436 = int_to_ptr.hbm [resolvable:$true] %s435
          %438 = dma.vmem_to_hbm [thread:$0]  %s434, 16, %s436, %s421
        $region56: #{tpu_custom_call.1} parent=31 // pred_fallthru
          _
      $region32: #{tpu_custom_call.1} parent=5 // pred_fallthru
        _
      %p439 = scmp.le.s32.totalorder 2, %s18
      // Predicated region
      $region57: #{tpu_custom_call.1} parent=5 // pred_check
        %p440 = pneg %p439
      $region58: #{tpu_custom_call.1} parent=5 // pred_check_branch
        %442 = sbr.rel (%p440) target = $region60
      $region59: #{tpu_custom_call.1} parent=5 // pred_region
        %s443 = ssub.s32 %s18, 2
        // Predicated region
        $region61: #{tpu_custom_call.1} parent=59 // pred_check
          %p444 = pneg %p152
        $region62: #{tpu_custom_call.1} parent=59 // pred_check_branch
          %446 = sbr.rel (%p444) target = $region64
        $region63: #{tpu_custom_call.1} parent=59 // pred_region
          %s447 = sand.u32 %s137, 1
          %s448 = scalar_lea.sflag [#allocation6], %s447
          %s449 = sand.u32 %s137, 1
          %s450 = scalar_lea.vmem [#allocation10], %s449
          %452 = dma.done %s448, 16
        $region64: #{tpu_custom_call.1} parent=59 // pred_fallthru
          _
      $region60: #{tpu_custom_call.1} parent=5 // pred_fallthru
        _
    $region6: #{tpu_custom_call.1} parent=1 // loop_footer
      %s22 = sadd.s32 1, %s18
    $region7: #{tpu_custom_call.1} parent=1 // loop_footer_branch
      %17 = sbr.rel target = $region3
    $region8: #{tpu_custom_call.1} parent=1 // loop_exit
      _
    %453 = vsyncpa [#allocation5], 1
    %s454 = scalar_lea.sflag [#allocation5], 1
    %455 = vsyncpa %s454, 1
    %456 = vsyncpa [#allocation8], 1
    %s457 = scalar_lea.sflag [#allocation8], 1
    %458 = vsyncpa %s457, 1
    %459 = vsyncpa [#allocation6], 1
    %s460 = scalar_lea.sflag [#allocation6], 1
    %461 = vsyncpa %s460, 1

</llo_original>
